<compile_context>
chip_gen: v7x
topology: tpu7x:2x2x1
jax: 0.10.0
libtpu: 0.0.40
codegen_flags: <defaults>
</compile_context>

<pallas_src>
import jax
import jax.numpy as jnp
from jax.experimental import pallas as pl
from jax.experimental.pallas import tpu as pltpu

HIDDEN = 768
PACK_N = 128          # lane-dense packed head width (col 0 = start, col 1 = end)
MAX_ROW_TILE = 2048   # 2048x768 f32 tile = 6 MiB; double-buffered ~13 MiB VMEM


def _round_up(x, m):
    return ((x + m - 1) // m) * m


def _choose_tiling(total_rows):
    """Pick a row tile that:
       (a) exactly divides total_rows (no wrapper-side jnp.pad / extra HBM pass),
       (b) is a multiple of 128, so the transposed (8, row_tile) output block is
           lane-dense and the streamed input block is sublane-aligned for both
           f32 (8) and bf16 (16),
       (c) gives >= 2 grid steps so v7x's two TensorCores both get work.
       Returns (row_tile, padded_rows, needs_pad)."""
    best = 0
    limit = min(total_rows // 2, MAX_ROW_TILE)
    t = 128
    while t <= limit:
        if total_rows % t == 0:
            best = t
        t += 128
    if best:
        return best, total_rows, False
    if total_rows <= MAX_ROW_TILE:
        # Small/awkward totals: single full-array tile, still no pad.
        return total_rows, total_rows, False
    # Pathological large & indivisible totals only: pad (extra HBM pass).
    padded = _round_up(total_rows, 1024)
    return 1024, padded, True


# ----------------------------------------------------------------------------
# Kernel 1: streaming QA head (one MXU matmul per row tile, transposed store)
# ----------------------------------------------------------------------------
def _qa_head_kernel(seq_ref, w_ref, b_ref, out_ref):
    # (row_tile, 768) @ (768, 128) -> f32 (row_tile, 128); cols 0/1 are the
    # start/end logits, the other MXU columns are zero padding (free: the
    # kernel is HBM-bound).  Keep only the first 8 columns and transpose so
    # the store is a small lane-dense (8, row_tile) slab.
    res = jnp.dot(seq_ref[...], w_ref[...],
                  preferred_element_type=jnp.float32) + b_ref[...]
    out_ref[...] = jnp.transpose(res[:, :8])          # (8, row_tile)


# ----------------------------------------------------------------------------
# Kernel 2: cls head + losses (tiny epilogue, runs once, no grid)
# ----------------------------------------------------------------------------
def _cls_and_loss_kernel(start_ref, end_ref, clsh_ref, wcls_ref, bcls_ref,
                         labels_ref, cls_out_ref, losses_ref):
    B, S = start_ref.shape
    start_logits = start_ref[...]                                  # (B, S) f32
    end_logits = end_ref[...]

    # cls_output = nn.Linear(768, 1): tiny (B, 768) contraction on the VPU.
    cls_h = clsh_ref[...].astype(jnp.float32)
    w_cls = wcls_ref[...].astype(jnp.float32)                      # (1, H)
    cls_logits = (jnp.sum(cls_h * w_cls, axis=-1, keepdims=True)
                  + bcls_ref[0])                                   # (B, 1)

    labels = labels_ref[...]                                       # (B, 3) f32
    cls_target = labels[:, 0:1]
    start_pos = labels[:, 1:2]
    end_pos = labels[:, 2:3]

    # torch loop: if isnan(start_position[i]): start/end -> ignore_index (= 0)
    nan_mask = jnp.isnan(start_pos)
    start_idx = jnp.where(nan_mask, 0.0, start_pos).astype(jnp.int32)
    end_idx = jnp.where(nan_mask, 0.0, end_pos).astype(jnp.int32)

    col = jax.lax.broadcasted_iota(jnp.int32, (B, S), 1)

    def _cross_entropy(logits, idx):
        # CrossEntropyLoss(ignore_index=0), mean over non-ignored targets.
        # NOTE: if every target in the batch is ignored the denominator is 0
        # and the loss is NaN -- same behaviour as torch's mean-reduction CE.
        m = jnp.max(logits, axis=-1, keepdims=True)
        logz = m + jnp.log(jnp.sum(jnp.exp(logits - m), axis=-1, keepdims=True))
        picked = jnp.sum(jnp.where(col == idx, logits, 0.0), axis=-1,
                         keepdims=True)
        valid = (idx != 0).astype(jnp.float32)
        num = jnp.sum((logz - picked) * valid, axis=0, keepdims=True)   # (1, 1)
        den = jnp.sum(valid, axis=0, keepdims=True)
        return num / den

    start_loss = _cross_entropy(start_logits, start_idx)            # (1, 1)
    end_loss = _cross_entropy(end_logits, end_idx)                  # (1, 1)

    # BCELoss(Sigmoid(cls_logits), cls_target) with torch's log clamp at -100
    p = 1.0 / (1.0 + jnp.exp(-cls_logits))
    logp = jnp.maximum(jnp.log(p), -100.0)
    log1mp = jnp.maximum(jnp.log(1.0 - p), -100.0)
    bce = -(cls_target * logp + (1.0 - cls_target) * log1mp)        # (B, 1)
    cls_loss = jnp.sum(bce, axis=0, keepdims=True) / float(B)       # (1, 1)

    # Lane-dense packed outputs (single unmasked store instead of (1,1)/(B,1)).
    lane1 = jax.lax.broadcasted_iota(jnp.int32, (1, PACK_N), 1)
    losses_ref[...] = (jnp.where(lane1 == 0, start_loss, 0.0)
                       + jnp.where(lane1 == 1, end_loss, 0.0)
                       + jnp.where(lane1 == 2, cls_loss, 0.0))
    laneb = jax.lax.broadcasted_iota(jnp.int32, (B, PACK_N), 1)
    cls_out_ref[...] = jnp.where(laneb == 0, cls_logits, 0.0)


# ----------------------------------------------------------------------------
# Kernel 3: cls head only (labels=None inference path; no loss plumbing)
# ----------------------------------------------------------------------------
def _cls_head_kernel(clsh_ref, wcls_ref, bcls_ref, cls_out_ref):
    B = clsh_ref.shape[0]
    cls_h = clsh_ref[...].astype(jnp.float32)
    w_cls = wcls_ref[...].astype(jnp.float32)
    cls_logits = (jnp.sum(cls_h * w_cls, axis=-1, keepdims=True)
                  + bcls_ref[0])                                    # (B, 1)
    laneb = jax.lax.broadcasted_iota(jnp.int32, (B, PACK_N), 1)
    cls_out_ref[...] = jnp.where(laneb == 0, cls_logits, 0.0)


# ----------------------------------------------------------------------------
# Wrapper: modified_bert.forward given backbone outputs
# ----------------------------------------------------------------------------
def modified_bert_heads(sequence_output, cls_output, params, labels):
    B, S, H = sequence_output.shape
    assert H == HIDDEN
    dtype = sequence_output.dtype      # stream in native dtype (bf16 or f32)

    # Pack qa head weights as columns 0/1 of a lane-dense (H, 128) slab (MXU).
    # NOTE: on the bf16 path the weight is quantized to bf16 to keep the MXU
    # operands matched; it is only 768x2 -- keep f32 upstream if loss fidelity
    # matters more than the matched-dtype matmul.
    w_packed = jnp.zeros((H, PACK_N), dtype)
    w_packed = w_packed.at[:, 0].set(params["qa_w"][0].astype(dtype))
    w_packed = w_packed.at[:, 1].set(params["qa_w"][1].astype(dtype))
    b_packed = jnp.zeros((1, PACK_N), jnp.float32)
    b_packed = b_packed.at[0, 0].set(params["qa_b"][0])
    b_packed = b_packed.at[0, 1].set(params["qa_b"][1])

    total = B * S
    row_tile, padded, needs_pad = _choose_tiling(total)
    seq2d = sequence_output.reshape(total, H)
    if needs_pad:
        # Only triggers for large totals not divisible by 128 (non-standard
        # BERT shapes); costs an extra HBM pass over the activation.
        seq2d = jnp.pad(seq2d, ((0, padded - total), (0, 0)))

    # Output: (8, B*S) f32, rows 0/1 = start/end logits, rows 2..7 zero.
    qa_t = pl.pallas_call(
        _qa_head_kernel,
        out_shape=jax.ShapeDtypeStruct((8, padded), jnp.float32),
        grid=(padded // row_tile,),
        in_specs=[
            pl.BlockSpec((row_tile, H), lambda i: (i, 0)),
            # constant index maps -> weight/bias stay resident across steps
            pl.BlockSpec((H, PACK_N), lambda i: (0, 0)),
            pl.BlockSpec((1, PACK_N), lambda i: (0, 0)),
        ],
        out_specs=pl.BlockSpec((8, row_tile), lambda i: (0, i)),
        compiler_params=pltpu.CompilerParams(
            dimension_semantics=("parallel",),
            vmem_limit_bytes=32 * 1024 * 1024),
    )(seq2d, w_packed, b_packed)

    # Contiguous row slices of a tiny slab (no strided lane picks).
    start_logits = qa_t[0, :total].reshape(B, S)
    end_logits = qa_t[1, :total].reshape(B, S)

    vm = lambda: pl.BlockSpec(memory_space=pltpu.MemorySpace.VMEM)
    sm = lambda: pl.BlockSpec(memory_space=pltpu.MemorySpace.SMEM)

    if labels is None:
        cls_pack = pl.pallas_call(
            _cls_head_kernel,
            out_shape=jax.ShapeDtypeStruct((B, PACK_N), jnp.float32),
            in_specs=[vm(), vm(), sm()],
            out_specs=vm(),
        )(cls_output, params["cls_w"], params["cls_b"])
        return (start_logits, end_logits, cls_pack[:, 0])

    lab = labels.astype(jnp.float32)
    cls_pack, losses_slab = pl.pallas_call(
        _cls_and_loss_kernel,
        out_shape=(
            jax.ShapeDtypeStruct((B, PACK_N), jnp.float32),   # cls_logits (lane 0)
            jax.ShapeDtypeStruct((1, PACK_N), jnp.float32),   # losses (lanes 0..2)
        ),
        in_specs=[vm(), vm(), vm(), vm(), sm(), vm()],
        out_specs=(vm(), vm()),
    )(start_logits, end_logits, cls_output, params["cls_w"], params["cls_b"],
      lab)

    cls_logits = cls_pack[:, 0]
    return ([losses_slab[0, 0], losses_slab[0, 1], losses_slab[0, 2]],
            cls_logits, start_logits, end_logits)


# ----------------------------------------------------------------------------
# Deterministic synthetic backbone (plain-JAX glue standing in for self.model)
# ----------------------------------------------------------------------------
def _normal(key, shape, scale=0.02):
    return scale * jax.random.normal(key, shape, dtype=jnp.float32)


def init_params(key, vocab=100, type_vocab=2, max_pos=64, hidden=HIDDEN, ffn=1024):
    ks = jax.random.split(key, 12)
    ones = lambda n: jnp.ones((n,), jnp.float32)
    zeros = lambda n: jnp.zeros((n,), jnp.float32)
    return {
        "word_emb": _normal(ks[0], (vocab, hidden)),
        "pos_emb": _normal(ks[1], (max_pos, hidden)),
        "type_emb": _normal(ks[2], (type_vocab, hidden)),
        "ln0_g": ones(hidden), "ln0_b": zeros(hidden),
        "wq": _normal(ks[3], (hidden, hidden)), "bq": zeros(hidden),
        "wk": _normal(ks[4], (hidden, hidden)), "bk": zeros(hidden),
        "wv": _normal(ks[5], (hidden, hidden)), "bv": zeros(hidden),
        "wo": _normal(ks[6], (hidden, hidden)), "bo": zeros(hidden),
        "ln1_g": ones(hidden), "ln1_b": zeros(hidden),
        "w1": _normal(ks[7], (hidden, ffn)), "b1": zeros(ffn),
        "w2": _normal(ks[8], (ffn, hidden)), "b2": zeros(hidden),
        "ln2_g": ones(hidden), "ln2_b": zeros(hidden),
        "wp": _normal(ks[9], (hidden, hidden)), "bp": zeros(hidden),
        # modified_bert's own heads (torch nn.Linear stores weight as (out, in))
        "qa_w": _normal(ks[10], (2, hidden)), "qa_b": zeros(2),
        "cls_w": _normal(ks[11], (1, hidden)), "cls_b": zeros(1),
    }


def _layer_norm(x, g, b, eps=1e-12):
    mu = jnp.mean(x, axis=-1, keepdims=True)
    var = jnp.mean((x - mu) ** 2, axis=-1, keepdims=True)
    return (x - mu) * jax.lax.rsqrt(var + eps) * g + b


def synthetic_bert(p, input_ids, token_type_ids, attention_mask, n_heads=12):
    B, S = input_ids.shape
    H = p["word_emb"].shape[-1]
    dh = H // n_heads
    x = (p["word_emb"][input_ids]
         + p["pos_emb"][jnp.arange(S)][None, :, :]
         + p["type_emb"][token_type_ids])
    x = _layer_norm(x, p["ln0_g"], p["ln0_b"])

    mask_bias = (1.0 - attention_mask.astype(jnp.float32))[:, None, None, :] * -1e4

    def split_heads(t):
        return t.reshape(B, S, n_heads, dh).transpose(0, 2, 1, 3)

    q = split_heads(x @ p["wq"] + p["bq"])
    k = split_heads(x @ p["wk"] + p["bk"])
    v = split_heads(x @ p["wv"] + p["bv"])
    scores = jnp.einsum("bhqd,bhkd->bhqk", q, k) / jnp.sqrt(float(dh)) + mask_bias
    attn = jax.nn.softmax(scores, axis=-1)
    ctx = jnp.einsum("bhqk,bhkd->bhqd", attn, v).transpose(0, 2, 1, 3).reshape(B, S, H)
    x = _layer_norm(x + (ctx @ p["wo"] + p["bo"]), p["ln1_g"], p["ln1_b"])
    h = jax.nn.gelu(x @ p["w1"] + p["b1"])
    x = _layer_norm(x + (h @ p["w2"] + p["b2"]), p["ln2_g"], p["ln2_b"])
    pooled = jnp.tanh(x[:, 0, :] @ p["wp"] + p["bp"])
    return x, pooled


# ----------------------------------------------------------------------------
# Pure-JAX reference (same math as the torch module) for a correctness check
# ----------------------------------------------------------------------------
def reference_forward(seq, cls_h, p, labels):
    qa = seq @ p["qa_w"].T + p["qa_b"]
    start_logits, end_logits = qa[..., 0], qa[..., 1]
    cls_logits = (cls_h @ p["cls_w"].T + p["cls_b"])[:, 0]
    cls_target, sp, ep = labels[:, 0], labels[:, 1], labels[:, 2]
    nanm = jnp.isnan(sp)
    sp = jnp.where(nanm, 0.0, sp).astype(jnp.int32)
    ep = jnp.where(nanm, 0.0, ep).astype(jnp.int32)

    def ce(logits, idx):
        logz = jax.scipy.special.logsumexp(logits, axis=-1)
        picked = jnp.take_along_axis(logits, idx[:, None], axis=-1)[:, 0]
        valid = (idx != 0).astype(jnp.float32)
        return jnp.sum((logz - picked) * valid) / jnp.sum(valid)

    sig = jax.nn.sigmoid(cls_logits)
    bce = -(cls_target * jnp.maximum(jnp.log(sig), -100.0)
            + (1.0 - cls_target) * jnp.maximum(jnp.log(1.0 - sig), -100.0))
    return ([ce(start_logits, sp), ce(end_logits, ep), jnp.mean(bce)],
            cls_logits, start_logits, end_logits)


if __name__ == "__main__":
    key = jax.random.PRNGKey(0)
    B, S = 2, 8
    pkey, ikey, akey, bkey, ckey = jax.random.split(key, 5)
    params = init_params(pkey)

    input_ids = jax.random.randint(ikey, (B, S), 0, 100, dtype=jnp.int32)
    token_type_ids = jnp.concatenate(
        [jnp.zeros((B, S // 2), jnp.int32), jnp.ones((B, S // 2), jnp.int32)], axis=1)
    attention_mask = jnp.ones((B, S), jnp.int32)
    # labels = [cls_target, start_position, end_position]; second row has a NaN
    # start to exercise the NaN -> ignore_index(0) path of the torch loop.
    labels = jnp.array([[1.0, 3.0, 5.0],
                        [0.0, jnp.nan, 6.0]], dtype=jnp.float32)

    seq_out, cls_out = synthetic_bert(params, input_ids, token_type_ids, attention_mask)

    def _close(a, b, tol):
        return bool(jnp.allclose(jnp.asarray(a), jnp.asarray(b), atol=tol, rtol=tol))

    # ---- f32 training path (single-tile grid) ----
    losses, cls_logits, start_logits, end_logits = modified_bert_heads(
        seq_out, cls_out, params, labels)
    jax.block_until_ready((losses, cls_logits, start_logits, end_logits))

    ref_losses, ref_cls, ref_start, ref_end = reference_forward(
        seq_out, cls_out, params, labels)

    ok = True
    for a, b in zip(losses, ref_losses):
        ok &= _close(a, b, 1e-2)
    ok &= _close(cls_logits, ref_cls, 1e-2)
    ok &= _close(start_logits, ref_start, 1e-2)
    ok &= _close(end_logits, ref_end, 1e-2)
    assert ok, "Pallas kernel mismatch vs pure-JAX reference (f32 path)"

    # ---- labels=None inference path ----
    s2, e2, c2 = modified_bert_heads(seq_out, cls_out, params, None)
    jax.block_until_ready((s2, e2, c2))
    ok &= _close(s2, ref_start, 1e-2)
    ok &= _close(e2, ref_end, 1e-2)
    ok &= _close(c2, ref_cls, 1e-2)
    assert ok, "Pallas kernel mismatch (labels=None path)"

    # ---- bf16 streaming path (halved HBM traffic); loose tolerance vs f32 ref ----
    losses16, cls16, start16, end16 = modified_bert_heads(
        seq_out.astype(jnp.bfloat16), cls_out.astype(jnp.bfloat16), params, labels)
    jax.block_until_ready((losses16, cls16, start16, end16))
    ok &= _close(start16, ref_start, 1e-1)
    ok &= _close(end16, ref_end, 1e-1)
    ok &= _close(cls16, ref_cls, 1e-1)
    for a, b in zip(losses16, ref_losses):
        ok &= _close(a, b, 1e-1)
    assert ok, "Pallas kernel mismatch (bf16 path)"

    # ---- realistic QA shape (B=2, S=384 -> 2 grid steps, tiled transpose path)
    # Skips the small synthetic backbone (max_pos=64); feeds random activations
    # straight into the heads to exercise the multi-step grid.
    Bq, Sq = 2, 384
    seq_big = 0.5 * jax.random.normal(akey, (Bq, Sq, HIDDEN), dtype=jnp.float32)
    cls_big = 0.5 * jax.random.normal(bkey, (Bq, HIDDEN), dtype=jnp.float32)
    labels_big = jnp.array([[1.0, 5.0, 100.0],
                            [0.0, jnp.nan, 200.0]], dtype=jnp.float32)
    losses_b, cls_b, start_b, end_b = modified_bert_heads(
        seq_big, cls_big, params, labels_big)
    jax.block_until_ready((losses_b, cls_b, start_b, end_b))
    refl_b, refc_b, refs_b, refe_b = reference_forward(
        seq_big, cls_big, params, labels_big)
    for a, b in zip(losses_b, refl_b):
        ok &= _close(a, b, 2e-2)
    ok &= _close(cls_b, refc_b, 2e-2)
    ok &= _close(start_b, refs_b, 2e-2)
    ok &= _close(end_b, refe_b, 2e-2)
    assert ok, "Pallas kernel mismatch (tiled multi-step path)"

    print("KERNEL_OK")
</pallas_src>

<mosaic_0001>
module attributes {stable_mosaic.version = 11 : i64} {
  func.func @_qa_head_kernel(%arg0: i32, %arg1: memref<16x768xf32, #tpu.memory_space<vmem>>, %arg2: memref<768x128xf32, #tpu.memory_space<vmem>>, %arg3: memref<1x128xf32, #tpu.memory_space<vmem>>, %arg4: memref<8x16xf32, #tpu.memory_space<vmem>>) attributes {dimension_semantics = [#tpu.dimension_semantics<parallel>], iteration_bounds = array<i64: 1>, scalar_prefetch = 0 : i64, scratch_operands = 0 : i64, tpu.core_type = #tpu.core_type<tc>, window_params = [{transform_indices = @transform_0, window_bounds = array<i64: 16, 768>}, {pipeline_mode = #tpu.pipeline_mode<synchronous>, transform_indices = @transform_1, window_bounds = array<i64: 768, 128>}, {pipeline_mode = #tpu.pipeline_mode<synchronous>, transform_indices = @transform_2, window_bounds = array<i64: 1, 128>}, {transform_indices = @transform_3, window_bounds = array<i64: 8, 16>}]} {
    %c0 = arith.constant 0 : index
    %c0_0 = arith.constant 0 : index
    %0 = vector.load %arg1[%c0, %c0_0] : memref<16x768xf32, #tpu.memory_space<vmem>>, vector<16x768xf32>
    %c0_1 = arith.constant 0 : index
    %c0_2 = arith.constant 0 : index
    %1 = vector.load %arg2[%c0_1, %c0_2] : memref<768x128xf32, #tpu.memory_space<vmem>>, vector<768x128xf32>
    %cst = arith.constant dense<0.000000e+00> : vector<16x128xf32>
    %2 = tpu.matmul %0, %1, %cst {dimension_numbers = #tpu.dot_dimension_numbers<[1], [0], [0], [1], [0, 0, 1, 1], [], []>} : vector<16x768xf32>, vector<768x128xf32>, vector<16x128xf32> -> vector<16x128xf32>
    %c0_3 = arith.constant 0 : index
    %c0_4 = arith.constant 0 : index
    %3 = vector.load %arg3[%c0_3, %c0_4] : memref<1x128xf32, #tpu.memory_space<vmem>>, vector<1x128xf32>
    %4 = vector.broadcast %3 : vector<1x128xf32> to vector<16x128xf32>
    %5 = arith.addf %2, %4 : vector<16x128xf32>
    %6 = vector.extract_strided_slice %5 {offsets = [0, 0], sizes = [16, 8], strides = [1, 1]} : vector<16x128xf32> to vector<16x8xf32>
    %7 = tpu.transpose %6, [1, 0] : vector<16x8xf32> -> vector<8x16xf32>
    %c0_5 = arith.constant 0 : index
    %c0_6 = arith.constant 0 : index
    %8 = vector.load %arg4[%c0_5, %c0_6] : memref<8x16xf32, #tpu.memory_space<vmem>>, vector<8x16xf32>
    tpu.vector_store %arg4[%c0_5, %c0_6], %7 {strides = array<i32>} : memref<8x16xf32, #tpu.memory_space<vmem>>, vector<8x16xf32>,
    return
  }
  func.func @transform_0(%arg0: i32) -> (i32, i32) {
    %c0_i32 = arith.constant 0 : i32
    %c0_i32_0 = arith.constant 0 : i32
    return %arg0, %c0_i32 : i32, i32
  }
  func.func @transform_1(%arg0: i32) -> (i32, i32) {
    %c0_i32 = arith.constant 0 : i32
    %c0_i32_0 = arith.constant 0 : i32
    %c0_i32_1 = arith.constant 0 : i32
    return %c0_i32, %c0_i32_0 : i32, i32
  }
  func.func @transform_2(%arg0: i32) -> (i32, i32) {
    %c0_i32 = arith.constant 0 : i32
    %c0_i32_0 = arith.constant 0 : i32
    %c0_i32_1 = arith.constant 0 : i32
    return %c0_i32, %c0_i32_0 : i32, i32
  }
  func.func @transform_3(%arg0: i32) -> (i32, i32) {
    %c0_i32 = arith.constant 0 : i32
    %c0_i32_0 = arith.constant 0 : i32
    return %c0_i32, %arg0 : i32, i32
  }
}

</mosaic_0001>

<llo_original>
// kernel: tpu_custom_call.1
$region0: #{tpu_custom_call.1}
  #allocation0 [shape = 'u32[]', space=smem, size = 0x4, offset = 0x4, fixed_abs, tag = 'smem constant byte address 0x4 - core index']
  #allocation1 [shape = 'u32[144,128]{1,0:T(1,128)}', space=vmem, size = 0x12000, scoped, tag = 'internal scratch']
  %s0 = inlined_call_operand.hbm [shape: f32[16,768], index: 0, kind: input, shape index: {}]
  %s1 = inlined_call_operand.hbm [shape: f32[768,128], index: 1, kind: input, shape index: {}]
  %s2 = inlined_call_operand.vmem [shape: f32[1,128], index: 2, kind: input, shape index: {}]
  %s3 = inlined_call_operand.hbm [shape: f32[8,16], index: 3, kind: output, shape index: {}]
  %s4 = sld [smem:[#allocation0]]
  $region30: #{tpu_custom_call.1} parent=0
    _
  %s6 = ssub.s32 1, %s4
  %s7 = scalar_select 0, %s6, %s4
  $region1: #{tpu_custom_call.1} parent=0
    #allocation2 [shape = 'u8[49152]{0}', space=vmem, size = 0xc000, scoped, tag = 'input window, operand 0, single buffered']
    #allocation3 [shape = 's32[1]{0}', space=sflag, size = 0x4, scoped, tag = 'scoped memory for tpu_custom_call.1']
    #allocation4 [shape = 's32[1]{0}', space=sflag, size = 0x4, scoped, tag = 'scoped memory for tpu_custom_call.1']
    #allocation5 [shape = 'u8[393216]{0}', space=vmem, size = 0x60000, scoped, tag = 'input window, operand 1, single buffered']
    #allocation6 [shape = 's32[1]{0}', space=sflag, size = 0x4, scoped, tag = 'scoped memory for tpu_custom_call.1']
    #allocation7 [shape = 'u8[4096]{0}', space=vmem, size = 0x1000, scoped, tag = 'output window, operand 0, single buffered']
    %8 = vsyncpa [#allocation3], 0
    %9 = vsyncpa [#allocation6], 0
    %10 = vsyncpa [#allocation4], 0
    // Predicated region
    $region2: #{tpu_custom_call.1} parent=1 // pred_check
      _
    $region3: #{tpu_custom_call.1} parent=1 // pred_check_branch
      %12 = sbr.rel (0) target = $region5
    $region4: #{tpu_custom_call.1} parent=1 // pred_region
      %s14 = ssub.s32 1536, 1536
      %15 = vsyncadd [#allocation3], %s14
      %s16 = sshll.u32 [#allocation2], 4
      %s17 = int_to_ptr.vmem [resolvable:$true] %s16
      %22 = dma.hbm_to_vmem [thread:$0]  %s0, 1536, %s17, [#allocation3], 768, 768, 48
    $region5: #{tpu_custom_call.1} parent=1 // pred_fallthru
      _
    // Predicated region
    $region6: #{tpu_custom_call.1} parent=1 // pred_check
      _
    $region7: #{tpu_custom_call.1} parent=1 // pred_check_branch
      %24 = sbr.rel (0) target = $region9
    $region8: #{tpu_custom_call.1} parent=1 // pred_region
      %s26 = ssub.s32 12288, 12288
      %27 = vsyncadd [#allocation6], %s26
      %s28 = sshll.u32 [#allocation5], 4
      %s29 = int_to_ptr.vmem [resolvable:$true] %s28
      %34 = dma.hbm_to_vmem [thread:$0]  %s1, 12288, %s29, [#allocation6], 128, 128, 8
    $region9: #{tpu_custom_call.1} parent=1 // pred_fallthru
      _
    // Predicated region
    $region10: #{tpu_custom_call.1} parent=1 // pred_check
      _
    $region11: #{tpu_custom_call.1} parent=1 // pred_check_branch
      %36 = sbr.rel (0) target = $region13
    $region12: #{tpu_custom_call.1} parent=1 // pred_region
      _
    $region13: #{tpu_custom_call.1} parent=1 // pred_fallthru
      _
    // Predicated region
    $region14: #{tpu_custom_call.1} parent=1 // pred_check
      _
    $region15: #{tpu_custom_call.1} parent=1 // pred_check_branch
      %38 = sbr.rel (0) target = $region17
    $region16: #{tpu_custom_call.1} parent=1 // pred_region
      %39 = dma.done [#allocation3], 1536
    $region17: #{tpu_custom_call.1} parent=1 // pred_fallthru
      _
    // Predicated region
    $region18: #{tpu_custom_call.1} parent=1 // pred_check
      _
    $region19: #{tpu_custom_call.1} parent=1 // pred_check_branch
      %41 = sbr.rel (0) target = $region21
    $region20: #{tpu_custom_call.1} parent=1 // pred_region
      %42 = dma.done [#allocation6], 12288
    $region21: #{tpu_custom_call.1} parent=1 // pred_fallthru
      _
    %v43 = vld [vmem:[#allocation2] sm:$0xff]
    %v44 = vld [vmem:[#allocation2 + $0x8] sm:$0xff]
    %v45 = vld [vmem:[#allocation2 + $0x10] sm:$0xff]
    %v46 = vld [vmem:[#allocation2 + $0x18] sm:$0xff]
    %v47 = vld [vmem:[#allocation2 + $0x20] sm:$0xff]
    %v48 = vld [vmem:[#allocation2 + $0x28] sm:$0xff]
    %v49 = vld [vmem:[#allocation2 + $0x30] sm:$0xff]
    %v50 = vld [vmem:[#allocation2 + $0x38] sm:$0xff]
    %v51 = vld [vmem:[#allocation2 + $0x40] sm:$0xff]
    %v52 = vld [vmem:[#allocation2 + $0x48] sm:$0xff]
    %v53 = vld [vmem:[#allocation2 + $0x50] sm:$0xff]
    %v54 = vld [vmem:[#allocation2 + $0x58] sm:$0xff]
    %v55 = vld [vmem:[#allocation5] sm:$0xff]
    %v56 = vld [vmem:[#allocation5 + $0x8] sm:$0xff]
    %v57 = vld [vmem:[#allocation5 + $0x10] sm:$0xff]
    %v58 = vld [vmem:[#allocation5 + $0x18] sm:$0xff]
    %v59 = vld [vmem:[#allocation5 + $0x20] sm:$0xff]
    %v60 = vld [vmem:[#allocation5 + $0x28] sm:$0xff]
    %v61 = vld [vmem:[#allocation5 + $0x30] sm:$0xff]
    %v62 = vld [vmem:[#allocation5 + $0x38] sm:$0xff]
    %v63 = vld [vmem:[#allocation5 + $0x40] sm:$0xff]
    %v64 = vld [vmem:[#allocation5 + $0x48] sm:$0xff]
    %v65 = vld [vmem:[#allocation5 + $0x50] sm:$0xff]
    %v66 = vld [vmem:[#allocation5 + $0x58] sm:$0xff]
    %v67 = vld [vmem:[#allocation5 + $0x60] sm:$0xff]
    %v68 = vld [vmem:[#allocation5 + $0x68] sm:$0xff]
    %v69 = vld [vmem:[#allocation5 + $0x70] sm:$0xff]
    %v70 = vld [vmem:[#allocation5 + $0x78] sm:$0xff]
    %v71 = vld [vmem:[#allocation5 + $0x80] sm:$0xff]
    %v72 = vld [vmem:[#allocation5 + $0x88] sm:$0xff]
    %v73 = vld [vmem:[#allocation5 + $0x90] sm:$0xff]
    %v74 = vld [vmem:[#allocation5 + $0x98] sm:$0xff]
    %v75 = vld [vmem:[#allocation5 + $0xa0] sm:$0xff]
    %v76 = vld [vmem:[#allocation5 + $0xa8] sm:$0xff]
    %v77 = vld [vmem:[#allocation5 + $0xb0] sm:$0xff]
    %v78 = vld [vmem:[#allocation5 + $0xb8] sm:$0xff]
    %v79 = vld [vmem:[#allocation5 + $0xc0] sm:$0xff]
    %v80 = vld [vmem:[#allocation5 + $0xc8] sm:$0xff]
    %v81 = vld [vmem:[#allocation5 + $0xd0] sm:$0xff]
    %v82 = vld [vmem:[#allocation5 + $0xd8] sm:$0xff]
    %v83 = vld [vmem:[#allocation5 + $0xe0] sm:$0xff]
    %v84 = vld [vmem:[#allocation5 + $0xe8] sm:$0xff]
    %v85 = vld [vmem:[#allocation5 + $0xf0] sm:$0xff]
    %v86 = vld [vmem:[#allocation5 + $0xf8] sm:$0xff]
    %v87 = vld [vmem:[#allocation5 + $0x100] sm:$0xff]
    %v88 = vld [vmem:[#allocation5 + $0x108] sm:$0xff]
    %v89 = vld [vmem:[#allocation5 + $0x110] sm:$0xff]
    %v90 = vld [vmem:[#allocation5 + $0x118] sm:$0xff]
    %v91 = vld [vmem:[#allocation5 + $0x120] sm:$0xff]
    %v92 = vld [vmem:[#allocation5 + $0x128] sm:$0xff]
    %v93 = vld [vmem:[#allocation5 + $0x130] sm:$0xff]
    %v94 = vld [vmem:[#allocation5 + $0x138] sm:$0xff]
    %v95 = vld [vmem:[#allocation5 + $0x140] sm:$0xff]
    %v96 = vld [vmem:[#allocation5 + $0x148] sm:$0xff]
    %v97 = vld [vmem:[#allocation5 + $0x150] sm:$0xff]
    %v98 = vld [vmem:[#allocation5 + $0x158] sm:$0xff]
    %v99 = vld [vmem:[#allocation5 + $0x160] sm:$0xff]
    %v100 = vld [vmem:[#allocation5 + $0x168] sm:$0xff]
    %v101 = vld [vmem:[#allocation5 + $0x170] sm:$0xff]
    %v102 = vld [vmem:[#allocation5 + $0x178] sm:$0xff]
    %v103 = vld [vmem:[#allocation5 + $0x180] sm:$0xff]
    %v104 = vld [vmem:[#allocation5 + $0x188] sm:$0xff]
    %v105 = vld [vmem:[#allocation5 + $0x190] sm:$0xff]
    %v106 = vld [vmem:[#allocation5 + $0x198] sm:$0xff]
    %v107 = vld [vmem:[#allocation5 + $0x1a0] sm:$0xff]
    %v108 = vld [vmem:[#allocation5 + $0x1a8] sm:$0xff]
    %v109 = vld [vmem:[#allocation5 + $0x1b0] sm:$0xff]
    %v110 = vld [vmem:[#allocation5 + $0x1b8] sm:$0xff]
    %v111 = vld [vmem:[#allocation5 + $0x1c0] sm:$0xff]
    %v112 = vld [vmem:[#allocation5 + $0x1c8] sm:$0xff]
    %v113 = vld [vmem:[#allocation5 + $0x1d0] sm:$0xff]
    %v114 = vld [vmem:[#allocation5 + $0x1d8] sm:$0xff]
    %v115 = vld [vmem:[#allocation5 + $0x1e0] sm:$0xff]
    %v116 = vld [vmem:[#allocation5 + $0x1e8] sm:$0xff]
    %v117 = vld [vmem:[#allocation5 + $0x1f0] sm:$0xff]
    %v118 = vld [vmem:[#allocation5 + $0x1f8] sm:$0xff]
    %v119 = vld [vmem:[#allocation5 + $0x200] sm:$0xff]
    %v120 = vld [vmem:[#allocation5 + $0x208] sm:$0xff]
    %v121 = vld [vmem:[#allocation5 + $0x210] sm:$0xff]
    %v122 = vld [vmem:[#allocation5 + $0x218] sm:$0xff]
    %v123 = vld [vmem:[#allocation5 + $0x220] sm:$0xff]
    %v124 = vld [vmem:[#allocation5 + $0x228] sm:$0xff]
    %v125 = vld [vmem:[#allocation5 + $0x230] sm:$0xff]
    %v126 = vld [vmem:[#allocation5 + $0x238] sm:$0xff]
    %v127 = vld [vmem:[#allocation5 + $0x240] sm:$0xff]
    %v128 = vld [vmem:[#allocation5 + $0x248] sm:$0xff]
    %v129 = vld [vmem:[#allocation5 + $0x250] sm:$0xff]
    %v130 = vld [vmem:[#allocation5 + $0x258] sm:$0xff]
    %v131 = vld [vmem:[#allocation5 + $0x260] sm:$0xff]
    %v132 = vld [vmem:[#allocation5 + $0x268] sm:$0xff]
    %v133 = vld [vmem:[#allocation5 + $0x270] sm:$0xff]
    %v134 = vld [vmem:[#allocation5 + $0x278] sm:$0xff]
    %v135 = vld [vmem:[#allocation5 + $0x280] sm:$0xff]
    %v136 = vld [vmem:[#allocation5 + $0x288] sm:$0xff]
    %v137 = vld [vmem:[#allocation5 + $0x290] sm:$0xff]
    %v138 = vld [vmem:[#allocation5 + $0x298] sm:$0xff]
    %v139 = vld [vmem:[#allocation5 + $0x2a0] sm:$0xff]
    %v140 = vld [vmem:[#allocation5 + $0x2a8] sm:$0xff]
    %v141 = vld [vmem:[#allocation5 + $0x2b0] sm:$0xff]
    %v142 = vld [vmem:[#allocation5 + $0x2b8] sm:$0xff]
    %v143 = vld [vmem:[#allocation5 + $0x2c0] sm:$0xff]
    %v144 = vld [vmem:[#allocation5 + $0x2c8] sm:$0xff]
    %v145 = vld [vmem:[#allocation5 + $0x2d0] sm:$0xff]
    %v146 = vld [vmem:[#allocation5 + $0x2d8] sm:$0xff]
    %v147 = vld [vmem:[#allocation5 + $0x2e0] sm:$0xff]
    %v148 = vld [vmem:[#allocation5 + $0x2e8] sm:$0xff]
    %v149 = vld [vmem:[#allocation5 + $0x2f0] sm:$0xff]
    %v150 = vld [vmem:[#allocation5 + $0x2f8] sm:$0xff]
    %v151 = vld [vmem:[%s2] sm:$0x1]
    %v153 = vlaneseq
    %v154 = vshrl.u32 %v153, 7
    %v155 = vsub.s32 0, %v154
    %v156 = vrot.slane %v151, %v155
    %158 = vmatprep.subr.mxu0 0.0
    %159 = vmatpush1.msra.mxu0 %v55
    %160 = vmatprep.subr.mxu0 0.0
    %161 = vmatpush1.msra.mxu0 %v56
    %162 = vmatprep.subr.mxu0 0.0
    %163 = vmatpush1.msra.mxu0 %v57
    %164 = vmatprep.subr.mxu0 0.0
    %165 = vmatpush1.msra.mxu0 %v58
    %166 = vmatprep.subr.mxu0 0.0
    %167 = vmatpush1.msra.mxu0 %v59
    %168 = vmatprep.subr.mxu0 0.0
    %169 = vmatpush1.msra.mxu0 %v60
    %170 = vmatprep.subr.mxu0 0.0
    %171 = vmatpush1.msra.mxu0 %v61
    %172 = vmatprep.subr.mxu0 0.0
    %173 = vmatpush1.msra.mxu0 %v62
    %174 = vmatprep.subr.mxu0 0.0
    %175 = vmatpush1.msra.mxu0 %v63
    %176 = vmatprep.subr.mxu0 0.0
    %177 = vmatpush1.msra.mxu0 %v64
    %178 = vmatprep.subr.mxu0 0.0
    %179 = vmatpush1.msra.mxu0 %v65
    %180 = vmatprep.subr.mxu0 0.0
    %181 = vmatpush1.msra.mxu0 %v66
    %182 = vmatprep.subr.mxu0 0.0
    %183 = vmatpush1.msra.mxu0 %v67
    %184 = vmatprep.subr.mxu0 0.0
    %185 = vmatpush1.msra.mxu0 %v68
    %186 = vmatprep.subr.mxu0 0.0
    %187 = vmatpush1.msra.mxu0 %v69
    %188 = vmatprep.subr.mxu0 0.0
    %189 = vmatpush1.msra.mxu0 %v70
    %190 = vmatprep.subr.mxu0 0.0
    %191 = vmatpush1.msra.mxu0 %v71
    %192 = vmatprep.subr.mxu0 0.0
    %193 = vmatpush1.msra.mxu0 %v72
    %194 = vmatprep.subr.mxu0 0.0
    %195 = vmatpush1.msra.mxu0 %v73
    %196 = vmatprep.subr.mxu0 0.0
    %197 = vmatpush1.msra.mxu0 %v74
    %198 = vmatprep.subr.mxu0 0.0
    %199 = vmatpush1.msra.mxu0 %v75
    %200 = vmatprep.subr.mxu0 0.0
    %201 = vmatpush1.msra.mxu0 %v76
    %202 = vmatprep.subr.mxu0 0.0
    %203 = vmatpush1.msra.mxu0 %v77
    %204 = vmatprep.subr.mxu0 0.0
    %205 = vmatpush1.msra.mxu0 %v78
    %206 = vmatprep.subr.mxu0 0.0
    %207 = vmatpush1.msra.mxu0 %v79
    %208 = vmatprep.subr.mxu0 0.0
    %209 = vmatpush1.msra.mxu0 %v80
    %210 = vmatprep.subr.mxu0 0.0
    %211 = vmatpush1.msra.mxu0 %v81
    %212 = vmatprep.subr.mxu0 0.0
    %213 = vmatpush1.msra.mxu0 %v82
    %214 = vmatprep.subr.mxu0 0.0
    %215 = vmatpush1.msra.mxu0 %v83
    %216 = vmatprep.subr.mxu0 0.0
    %217 = vmatpush1.msra.mxu0 %v84
    %218 = vmatprep.subr.mxu0 0.0
    %219 = vmatpush1.msra.mxu0 %v85
    %220 = vmatprep.subr.mxu0 0.0
    %221 = vmatpush1.msra.mxu0 %v86
    %222 = vmatprep.mubr.f32.mxu0 %v44
    %223 = vmatmul.mubr.f32.gmra.mrb[0].mxu0 %v43
    %v224 = vpop.f32.mrb[0].mxu0
    %v225 = vadd.f32 %v156, %v224
    %v226 = vpop.f32.mrb[0].mxu0
    %227 = vmatprep.mubr.f32.mxu0 %v50
    %228 = vmatmul.mubr.f32.gmra.mrb[0].mxu0 %v49
    %v229 = vpop.f32.mrb[0].mxu0
    %v230 = vadd.f32 %v156, %v229
    %v231 = vpop.f32.mrb[0].mxu0
    %232 = vdwg.mxu0
    %233 = vmatprep.subr.mxu0 0.0
    %234 = vmatpush1.msra.mxu0 %v87
    %235 = vmatprep.subr.mxu0 0.0
    %236 = vmatpush1.msra.mxu0 %v88
    %237 = vmatprep.subr.mxu0 0.0
    %238 = vmatpush1.msra.mxu0 %v89
    %239 = vmatprep.subr.mxu0 0.0
    %240 = vmatpush1.msra.mxu0 %v90
    %241 = vmatprep.subr.mxu0 0.0
    %242 = vmatpush1.msra.mxu0 %v91
    %243 = vmatprep.subr.mxu0 0.0
    %244 = vmatpush1.msra.mxu0 %v92
    %245 = vmatprep.subr.mxu0 0.0
    %246 = vmatpush1.msra.mxu0 %v93
    %247 = vmatprep.subr.mxu0 0.0
    %248 = vmatpush1.msra.mxu0 %v94
    %249 = vmatprep.subr.mxu0 0.0
    %250 = vmatpush1.msra.mxu0 %v95
    %251 = vmatprep.subr.mxu0 0.0
    %252 = vmatpush1.msra.mxu0 %v96
    %253 = vmatprep.subr.mxu0 0.0
    %254 = vmatpush1.msra.mxu0 %v97
    %255 = vmatprep.subr.mxu0 0.0
    %256 = vmatpush1.msra.mxu0 %v98
    %257 = vmatprep.subr.mxu0 0.0
    %258 = vmatpush1.msra.mxu0 %v99
    %259 = vmatprep.subr.mxu0 0.0
    %260 = vmatpush1.msra.mxu0 %v100
    %261 = vmatprep.subr.mxu0 0.0
    %262 = vmatpush1.msra.mxu0 %v101
    %263 = vmatprep.subr.mxu0 0.0
    %264 = vmatpush1.msra.mxu0 %v102
    %265 = vmatprep.subr.mxu0 0.0
    %266 = vmatpush1.msra.mxu0 %v103
    %267 = vmatprep.subr.mxu0 0.0
    %268 = vmatpush1.msra.mxu0 %v104
    %269 = vmatprep.subr.mxu0 0.0
    %270 = vmatpush1.msra.mxu0 %v105
    %271 = vmatprep.subr.mxu0 0.0
    %272 = vmatpush1.msra.mxu0 %v106
    %273 = vmatprep.subr.mxu0 0.0
    %274 = vmatpush1.msra.mxu0 %v107
    %275 = vmatprep.subr.mxu0 0.0
    %276 = vmatpush1.msra.mxu0 %v108
    %277 = vmatprep.subr.mxu0 0.0
    %278 = vmatpush1.msra.mxu0 %v109
    %279 = vmatprep.subr.mxu0 0.0
    %280 = vmatpush1.msra.mxu0 %v110
    %281 = vmatprep.subr.mxu0 0.0
    %282 = vmatpush1.msra.mxu0 %v111
    %283 = vmatprep.subr.mxu0 0.0
    %284 = vmatpush1.msra.mxu0 %v112
    %285 = vmatprep.subr.mxu0 0.0
    %286 = vmatpush1.msra.mxu0 %v113
    %287 = vmatprep.subr.mxu0 0.0
    %288 = vmatpush1.msra.mxu0 %v114
    %289 = vmatprep.subr.mxu0 0.0
    %290 = vmatpush1.msra.mxu0 %v115
    %291 = vmatprep.subr.mxu0 0.0
    %292 = vmatpush1.msra.mxu0 %v116
    %293 = vmatprep.subr.mxu0 0.0
    %294 = vmatpush1.msra.mxu0 %v117
    %295 = vmatprep.subr.mxu0 0.0
    %296 = vmatpush1.msra.mxu0 %v118
    %297 = vmatprep.mubr.f32.mxu0 %v46
    %298 = vmatmul.mubr.f32.gmra.mrb[0].mxu0 %v45
    %v299 = vpop.f32.mrb[0].mxu0
    %v300 = vadd.f32 %v225, %v299
    %v301 = vpop.f32.mrb[0].mxu0
    %302 = vmatprep.mubr.f32.mxu0 %v52
    %303 = vmatmul.mubr.f32.gmra.mrb[0].mxu0 %v51
    %v304 = vpop.f32.mrb[0].mxu0
    %v305 = vadd.f32 %v230, %v304
    %v306 = vpop.f32.mrb[0].mxu0
    %307 = vdwg.mxu0
    %308 = vmatprep.subr.mxu0 0.0
    %309 = vmatpush1.msra.mxu0 %v119
    %310 = vmatprep.subr.mxu0 0.0
    %311 = vmatpush1.msra.mxu0 %v120
    %312 = vmatprep.subr.mxu0 0.0
    %313 = vmatpush1.msra.mxu0 %v121
    %314 = vmatprep.subr.mxu0 0.0
    %315 = vmatpush1.msra.mxu0 %v122
    %316 = vmatprep.subr.mxu0 0.0
    %317 = vmatpush1.msra.mxu0 %v123
    %318 = vmatprep.subr.mxu0 0.0
    %319 = vmatpush1.msra.mxu0 %v124
    %320 = vmatprep.subr.mxu0 0.0
    %321 = vmatpush1.msra.mxu0 %v125
    %322 = vmatprep.subr.mxu0 0.0
    %323 = vmatpush1.msra.mxu0 %v126
    %324 = vmatprep.subr.mxu0 0.0
    %325 = vmatpush1.msra.mxu0 %v127
    %326 = vmatprep.subr.mxu0 0.0
    %327 = vmatpush1.msra.mxu0 %v128
    %328 = vmatprep.subr.mxu0 0.0
    %329 = vmatpush1.msra.mxu0 %v129
    %330 = vmatprep.subr.mxu0 0.0
    %331 = vmatpush1.msra.mxu0 %v130
    %332 = vmatprep.subr.mxu0 0.0
    %333 = vmatpush1.msra.mxu0 %v131
    %334 = vmatprep.subr.mxu0 0.0
    %335 = vmatpush1.msra.mxu0 %v132
    %336 = vmatprep.subr.mxu0 0.0
    %337 = vmatpush1.msra.mxu0 %v133
    %338 = vmatprep.subr.mxu0 0.0
    %339 = vmatpush1.msra.mxu0 %v134
    %340 = vmatprep.subr.mxu0 0.0
    %341 = vmatpush1.msra.mxu0 %v135
    %342 = vmatprep.subr.mxu0 0.0
    %343 = vmatpush1.msra.mxu0 %v136
    %344 = vmatprep.subr.mxu0 0.0
    %345 = vmatpush1.msra.mxu0 %v137
    %346 = vmatprep.subr.mxu0 0.0
    %347 = vmatpush1.msra.mxu0 %v138
    %348 = vmatprep.subr.mxu0 0.0
    %349 = vmatpush1.msra.mxu0 %v139
    %350 = vmatprep.subr.mxu0 0.0
    %351 = vmatpush1.msra.mxu0 %v140
    %352 = vmatprep.subr.mxu0 0.0
    %353 = vmatpush1.msra.mxu0 %v141
    %354 = vmatprep.subr.mxu0 0.0
    %355 = vmatpush1.msra.mxu0 %v142
    %356 = vmatprep.subr.mxu0 0.0
    %357 = vmatpush1.msra.mxu0 %v143
    %358 = vmatprep.subr.mxu0 0.0
    %359 = vmatpush1.msra.mxu0 %v144
    %360 = vmatprep.subr.mxu0 0.0
    %361 = vmatpush1.msra.mxu0 %v145
    %362 = vmatprep.subr.mxu0 0.0
    %363 = vmatpush1.msra.mxu0 %v146
    %364 = vmatprep.subr.mxu0 0.0
    %365 = vmatpush1.msra.mxu0 %v147
    %366 = vmatprep.subr.mxu0 0.0
    %367 = vmatpush1.msra.mxu0 %v148
    %368 = vmatprep.subr.mxu0 0.0
    %369 = vmatpush1.msra.mxu0 %v149
    %370 = vmatprep.subr.mxu0 0.0
    %371 = vmatpush1.msra.mxu0 %v150
    %372 = vmatprep.mubr.f32.mxu0 %v48
    %373 = vmatmul.mubr.f32.gmra.mrb[0].mxu0 %v47
    %v374 = vpop.f32.mrb[0].mxu0
    %v375 = vadd.f32 %v300, %v374
    %v376 = vpop.f32.mrb[0].mxu0
    %377 = vmatprep.mubr.f32.mxu0 %v54
    %378 = vmatmul.mubr.f32.gmra.mrb[0].mxu0 %v53
    %v379 = vpop.f32.mrb[0].mxu0
    %v380 = vadd.f32 %v305, %v379
    %v381 = vpop.f32.mrb[0].mxu0
    %382 = vdwg.mxu0
    %383 = vxpose.xlu0.b32.start [1/16] %v375, 128
    %384 = vxpose.xlu0.b32.cont [2/16] %v380, 128
    %385 = vxpose.xlu0.b32.cont [3/16] 0.0, 128
    %386 = vxpose.xlu0.b32.cont [4/16] 0.0, 128
    %387 = vxpose.xlu0.b32.cont [5/16] 0.0, 128
    %388 = vxpose.xlu0.b32.cont [6/16] 0.0, 128
    %389 = vxpose.xlu0.b32.cont [7/16] 0.0, 128
    %390 = vxpose.xlu0.b32.cont [8/16] 0.0, 128
    %391 = vxpose.xlu0.b32.cont [9/16] 0.0, 128
    %392 = vxpose.xlu0.b32.cont [10/16] 0.0, 128
    %393 = vxpose.xlu0.b32.cont [11/16] 0.0, 128
    %394 = vxpose.xlu0.b32.cont [12/16] 0.0, 128
    %395 = vxpose.xlu0.b32.cont [13/16] 0.0, 128
    %396 = vxpose.xlu0.b32.cont [14/16] 0.0, 128
    %397 = vxpose.xlu0.b32.cont [15/16] 0.0, 128
    %398 = vxpose.xlu0.b32.end [16/16] 0.0, 128
    %v399 = vpop.trf.xlu0
    %v400 = vpop.trf.xlu0
    %v401 = vpop.trf.xlu0
    %v402 = vpop.trf.xlu0
    %v403 = vpop.trf.xlu0
    %v404 = vpop.trf.xlu0
    %v405 = vpop.trf.xlu0
    %v406 = vpop.trf.xlu0
    %v407 = vpop.trf.xlu0
    %v408 = vpop.trf.xlu0
    %v409 = vpop.trf.xlu0
    %v410 = vpop.trf.xlu0
    %v411 = vpop.trf.xlu0
    %v412 = vpop.trf.xlu0
    %v413 = vpop.trf.xlu0
    %v414 = vpop.trf.xlu0
    %vm415 = vcmask 130048
    %416 = vst.msk [vmem:[#allocation7] sm:$0xff] %vm415, %v399
    // Predicated region
    $region22: #{tpu_custom_call.1} parent=1 // pred_check
      _
    $region23: #{tpu_custom_call.1} parent=1 // pred_check_branch
      %418 = sbr.rel (0) target = $region25
    $region24: #{tpu_custom_call.1} parent=1 // pred_region
      %s420 = ssub.s32 128, 128
      %421 = vsyncadd [#allocation4], %s420
      %s423 = sshll.u32 [#allocation7], 4
      %s424 = int_to_ptr.vmem [resolvable:$true] %s423
      %426 = dma.vmem_to_hbm [thread:$0]  %s424, 128, %s3, [#allocation4]
    $region25: #{tpu_custom_call.1} parent=1 // pred_fallthru
      _
    // Predicated region
    $region26: #{tpu_custom_call.1} parent=1 // pred_check
      _
    $region27: #{tpu_custom_call.1} parent=1 // pred_check_branch
      %428 = sbr.rel (0) target = $region29
    $region28: #{tpu_custom_call.1} parent=1 // pred_region
      %429 = dma.done [#allocation4], 128
    $region29: #{tpu_custom_call.1} parent=1 // pred_fallthru
      _
    %430 = vsyncpa [#allocation3], 1
    %431 = vsyncpa [#allocation6], 1
    %432 = vsyncpa [#allocation4], 1

</llo_original>
